<compile_context>
chip_gen: v7x
topology: tpu7x:2x2x1
jax: 0.10.0
libtpu: 0.0.40
codegen_flags: <defaults>
</compile_context>

<pallas_src>
import functools

import jax
import jax.numpy as jnp
from jax.experimental import pallas as pl
from jax.experimental.pallas import tpu as pltpu

_EPS = 1e-8        # torch.cosine_similarity default eps
_LANES = 128       # lane width for the lane-dense per-core output block


def _cosine_mse_kernel(u_ref, v_ref, t_ref, o_ref, acc_ref, *, tb):
    c = pl.program_id(0)            # core-parallel axis
    i = pl.program_id(1)            # batch reduction axis
    nsteps = pl.num_programs(1)

    @pl.when(i == 0)
    def _():
        acc_ref[...] = jnp.zeros_like(acc_ref)

    # Compute in f32 regardless of input dtype (v5e VPU/EUP have no bf16 path).
    u = u_ref[...].astype(jnp.float32)          # (tb, D)
    v = v_ref[...].astype(jnp.float32)          # (tb, D)

    # Per-row cosine similarity: three multiply-reduce streams + one EUP rsqrt.
    dot = jnp.sum(u * v, axis=-1, keepdims=True)        # (tb, 1)
    s1 = jnp.sum(u * u, axis=-1, keepdims=True)         # (tb, 1)
    s2 = jnp.sum(v * v, axis=-1, keepdims=True)         # (tb, 1)
    # max(sqrt(x), eps) == sqrt(max(x, eps^2))  ->  single fused rsqrt.
    sim = dot * jax.lax.rsqrt(jnp.maximum(s1 * s2, jnp.float32(_EPS * _EPS)))

    # Target is resident in VMEM (fetched once); slice this step's rows.
    row0 = pl.multiple_of((c * nsteps + i) * tb, tb)
    t = t_ref[pl.ds(row0, tb), :]                       # (tb, 1), already f32

    diff = sim - t
    acc_ref[...] += jnp.sum(diff * diff, keepdims=True)  # (1, 1) scratch

    @pl.when(i == nsteps - 1)
    def _():
        # Single lane-dense store per core; lane 0 carries the partial SSE.
        o_ref[...] = jnp.broadcast_to(acc_ref[...], o_ref.shape)


def _round_up(x: int, m: int) -> int:
    return ((x + m - 1) // m) * m


def _pick_tiling(b: int, d: int, itemsize: int, nc: int):
    """Largest batch tile whose double-buffered DMA footprint plus the f32
    upcast temporaries fit a per-generation VMEM budget; also returns the
    matching vmem_limit_bytes to hand to the compiler."""
    try:
        vmem_cap = int(pltpu.get_tpu_info().vmem_capacity_bytes)
    except Exception:
        vmem_cap = 64 * 1024 * 1024          # v7x-safe conservative fallback
    tile_budget = (vmem_cap * 3) // 8        # ~48 MiB on v5e/v6e, ~24 MiB on v7x
    vmem_limit = min((vmem_cap * 3) // 4, 128 * 1024 * 1024)

    # Per-row bytes: 2 inputs x 2 pipeline buffers x D x itemsize (DMA buffers)
    #              + ~3 x D x 4 for the in-kernel f32 upcasts / product temp.
    bytes_per_row = 2 * 2 * d * itemsize + 3 * d * 4
    max_tb = max(8, tile_budget // bytes_per_row)

    tb = 8
    for cand in (8192, 4096, 2048, 1024, 512, 256, 128, 64, 32, 16, 8):
        if cand <= max_tb:
            tb = cand
            break
    # Never make the tile larger than one core's share of the (padded) batch.
    per_core_rows = (b + nc - 1) // nc
    tb = max(8, min(tb, _round_up(per_core_rows, 8)))
    return tb, vmem_limit


def cosine_similarity_loss(output1: jax.Array,
                           output2: jax.Array,
                           target: jax.Array) -> jax.Array:
    """Pallas equivalent of CosineSimilarityLoss.forward. Returns a scalar."""
    assert output1.shape == output2.shape and output1.ndim == 2
    b, d = output1.shape
    nc = 2   # split the batch across TensorCores (serial, near-free on 1-TC chips)

    itemsize = jnp.dtype(output1.dtype).itemsize
    tb, vmem_limit = _pick_tiling(b, d, itemsize, nc)

    # Zero-pad the batch up to a multiple of nc * tb. Zero rows contribute
    # exactly 0 to the loss (sim = 0 via the eps clamp, target padded with 0).
    b_pad = _round_up(b, nc * tb)
    t2d = target.reshape(b, 1).astype(jnp.float32)
    if b_pad != b:
        pad = ((0, b_pad - b), (0, 0))
        output1 = jnp.pad(output1, pad)
        output2 = jnp.pad(output2, pad)
        t2d = jnp.pad(t2d, pad)

    nsteps = b_pad // (nc * tb)
    kernel = functools.partial(_cosine_mse_kernel, tb=tb)

    # TODO(synk): for extremely large B the resident (B,1) target would eat
    # VMEM; stream it per-step in that regime.
    out = pl.pallas_call(
        kernel,
        out_shape=jax.ShapeDtypeStruct((1, nc * _LANES), jnp.float32),
        grid=(nc, nsteps),
        in_specs=[
            pl.BlockSpec((tb, d), lambda c, i: (c * nsteps + i, 0)),
            pl.BlockSpec((tb, d), lambda c, i: (c * nsteps + i, 0)),
            # Whole target resident in VMEM (constant block index -> one DMA).
            pl.BlockSpec((b_pad, 1), lambda c, i: (0, 0)),
        ],
        out_specs=pl.BlockSpec((1, _LANES), lambda c, i: (0, c)),
        scratch_shapes=[pltpu.VMEM((1, 1), jnp.float32)],
        compiler_params=pltpu.CompilerParams(
            dimension_semantics=("parallel", "arbitrary"),
            vmem_limit_bytes=int(vmem_limit),
        ),
    )(output1, output2, t2d)

    # Lane 0 of each core's 128-lane block carries that core's partial SSE.
    partials = out.reshape(nc, _LANES)[:, 0]
    return jnp.sum(partials) * jnp.float32(1.0 / b)   # mean over the true batch


def _reference(output1, output2, target):
    u = output1.astype(jnp.float32)
    v = output2.astype(jnp.float32)
    dot = jnp.sum(u * v, axis=-1)
    n1 = jnp.linalg.norm(u, axis=-1)
    n2 = jnp.linalg.norm(v, axis=-1)
    sim = dot / jnp.maximum(n1 * n2, _EPS)
    return jnp.mean((sim - target.reshape(-1)) ** 2)


if __name__ == "__main__":
    key = jax.random.PRNGKey(0)
    k1, k2, k3 = jax.random.split(key, 3)

    B, D = 8, 32  # two sentence embeddings per example, hidden size 32
    output1 = jax.random.normal(k1, (B, D), dtype=jnp.float32)
    output2 = jax.random.normal(k2, (B, D), dtype=jnp.float32)
    target = jax.random.uniform(k3, (B,), dtype=jnp.float32)  # float labels

    loss = cosine_similarity_loss(output1, output2, target)
    jax.block_until_ready(loss)

    ref = _reference(output1, output2, target)
    assert jnp.allclose(loss, ref, atol=1e-5, rtol=1e-5), (loss, ref)

    print("KERNEL_OK")
</pallas_src>

<mosaic_0001>
module attributes {stable_mosaic.version = 11 : i64} {
  func.func @_cosine_mse_kernel(%arg0: i32, %arg1: i32, %arg2: memref<8x32xf32, #tpu.memory_space<vmem>>, %arg3: memref<8x32xf32, #tpu.memory_space<vmem>>, %arg4: memref<16x1xf32, #tpu.memory_space<vmem>>, %arg5: memref<1x128xf32, #tpu.memory_space<vmem>>, %arg6: memref<1x1xf32, #tpu.memory_space<vmem>>) attributes {dimension_semantics = [#tpu.dimension_semantics<parallel>, #tpu.dimension_semantics<arbitrary>], iteration_bounds = array<i64: 2, 1>, scalar_prefetch = 0 : i64, scratch_operands = 1 : i64, tpu.core_type = #tpu.core_type<tc>, window_params = [{transform_indices = @transform_0, window_bounds = array<i64: 8, 32>}, {transform_indices = @transform_1, window_bounds = array<i64: 8, 32>}, {pipeline_mode = #tpu.pipeline_mode<synchronous>, transform_indices = @transform_2, window_bounds = array<i64: 16, 1>}, {transform_indices = @transform_3, window_bounds = array<i64: 1, 128>}]} {
    %c0_i32 = arith.constant 0 : i32
    %0 = arith.cmpi eq, %arg1, %c0_i32 : i32
    %1 = arith.extui %0 : i1 to i32
    %c0_i32_0 = arith.constant 0 : i32
    %2 = arith.cmpi ne, %1, %c0_i32_0 : i32
    scf.if %2 {
      %cst_15 = arith.constant 0.000000e+00 : f32
      %38 = vector.broadcast %cst_15 : f32 to vector<1x1xf32>
      %c0_16 = arith.constant 0 : index
      %c0_17 = arith.constant 0 : index
      %39 = vector.load %arg6[%c0_16, %c0_17] : memref<1x1xf32, #tpu.memory_space<vmem>>, vector<1x1xf32>
      tpu.vector_store %arg6[%c0_16, %c0_17], %38 {strides = array<i32>} : memref<1x1xf32, #tpu.memory_space<vmem>>, vector<1x1xf32>,
    } else {
    }
    %c0 = arith.constant 0 : index
    %c0_1 = arith.constant 0 : index
    %3 = vector.load %arg2[%c0, %c0_1] : memref<8x32xf32, #tpu.memory_space<vmem>>, vector<8x32xf32>
    %c0_2 = arith.constant 0 : index
    %c0_3 = arith.constant 0 : index
    %4 = vector.load %arg3[%c0_2, %c0_3] : memref<8x32xf32, #tpu.memory_space<vmem>>, vector<8x32xf32>
    %5 = arith.mulf %3, %4 : vector<8x32xf32>
    %cst = arith.constant dense<0.000000e+00> : vector<8xf32>
    %6 = vector.multi_reduction <add>, %5, %cst [1] : vector<8x32xf32> to vector<8xf32>
    %7 = vector.shape_cast %6 : vector<8xf32> to vector<8x1xf32>
    %8 = arith.mulf %3, %3 : vector<8x32xf32>
    %cst_4 = arith.constant dense<0.000000e+00> : vector<8xf32>
    %9 = vector.multi_reduction <add>, %8, %cst_4 [1] : vector<8x32xf32> to vector<8xf32>
    %10 = vector.shape_cast %9 : vector<8xf32> to vector<8x1xf32>
    %11 = arith.mulf %4, %4 : vector<8x32xf32>
    %cst_5 = arith.constant dense<0.000000e+00> : vector<8xf32>
    %12 = vector.multi_reduction <add>, %11, %cst_5 [1] : vector<8x32xf32> to vector<8xf32>
    %13 = vector.shape_cast %12 : vector<8xf32> to vector<8x1xf32>
    %14 = arith.mulf %10, %13 : vector<8x1xf32>
    %cst_6 = arith.constant 1.000000e-16 : f32
    %15 = vector.broadcast %cst_6 : f32 to vector<8x1xf32>
    %16 = arith.maximumf %14, %15 : vector<8x1xf32>
    %17 = math.rsqrt %16 : vector<8x1xf32>
    %18 = arith.mulf %7, %17 : vector<8x1xf32>
    %c1_i32 = arith.constant 1 : i32
    %19 = arith.muli %arg0, %c1_i32 : i32
    %20 = arith.addi %19, %arg1 : i32
    %c8_i32 = arith.constant 8 : i32
    %21 = arith.muli %20, %c8_i32 : i32
    %22 = tpu.assume_multiple %21, 8 : i32
    %23 = arith.index_cast %22 : i32 to index
    %c0_7 = arith.constant 0 : index
    %24 = vector.load %arg4[%23, %c0_7] : memref<16x1xf32, #tpu.memory_space<vmem>>, vector<8x1xf32>
    %25 = arith.subf %18, %24 : vector<8x1xf32>
    %c0_8 = arith.constant 0 : index
    %c0_9 = arith.constant 0 : index
    %26 = vector.load %arg6[%c0_8, %c0_9] : memref<1x1xf32, #tpu.memory_space<vmem>>, vector<1x1xf32>
    %27 = arith.mulf %25, %25 : vector<8x1xf32>
    %28 = vector.shape_cast %27 : vector<8x1xf32> to vector<1x8x1xf32>
    %cst_10 = arith.constant dense<0.000000e+00> : vector<1xf32>
    %29 = vector.multi_reduction <add>, %28, %cst_10 [1, 2] : vector<1x8x1xf32> to vector<1xf32>
    %30 = vector.shape_cast %29 : vector<1xf32> to vector<1x1x1xf32>
    %31 = vector.extract %30[0, 0, 0] : f32 from vector<1x1x1xf32>
    %32 = vector.broadcast %31 : f32 to vector<1x1xf32>
    %33 = arith.addf %26, %32 : vector<1x1xf32>
    %c0_11 = arith.constant 0 : index
    %c0_12 = arith.constant 0 : index
    %34 = vector.load %arg6[%c0_11, %c0_12] : memref<1x1xf32, #tpu.memory_space<vmem>>, vector<1x1xf32>
    tpu.vector_store %arg6[%c0_11, %c0_12], %33 {strides = array<i32>} : memref<1x1xf32, #tpu.memory_space<vmem>>, vector<1x1xf32>,
    %c0_i32_13 = arith.constant 0 : i32
    %35 = arith.cmpi eq, %arg1, %c0_i32_13 : i32
    %36 = arith.extui %35 : i1 to i32
    %c0_i32_14 = arith.constant 0 : i32
    %37 = arith.cmpi ne, %36, %c0_i32_14 : i32
    scf.if %37 {
      %c0_15 = arith.constant 0 : index
      %c0_16 = arith.constant 0 : index
      %38 = vector.load %arg6[%c0_15, %c0_16] : memref<1x1xf32, #tpu.memory_space<vmem>>, vector<1x1xf32>
      %39 = vector.shape_cast %38 : vector<1x1xf32> to vector<1x1xf32>
      %40 = vector.broadcast %39 : vector<1x1xf32> to vector<1x128xf32>
      %c0_17 = arith.constant 0 : index
      %c0_18 = arith.constant 0 : index
      %41 = vector.load %arg5[%c0_17, %c0_18] : memref<1x128xf32, #tpu.memory_space<vmem>>, vector<1x128xf32>
      tpu.vector_store %arg5[%c0_17, %c0_18], %40 {strides = array<i32>} : memref<1x128xf32, #tpu.memory_space<vmem>>, vector<1x128xf32>,
    } else {
    }
    return
  }
  func.func @transform_0(%arg0: i32, %arg1: i32) -> (i32, i32) {
    %c1_i32 = arith.constant 1 : i32
    %0 = arith.muli %arg0, %c1_i32 : i32
    %1 = arith.addi %0, %arg1 : i32
    %c0_i32 = arith.constant 0 : i32
    %c0_i32_0 = arith.constant 0 : i32
    return %1, %c0_i32 : i32, i32
  }
  func.func @transform_1(%arg0: i32, %arg1: i32) -> (i32, i32) {
    %c1_i32 = arith.constant 1 : i32
    %0 = arith.muli %arg0, %c1_i32 : i32
    %1 = arith.addi %0, %arg1 : i32
    %c0_i32 = arith.constant 0 : i32
    %c0_i32_0 = arith.constant 0 : i32
    return %1, %c0_i32 : i32, i32
  }
  func.func @transform_2(%arg0: i32, %arg1: i32) -> (i32, i32) {
    %c0_i32 = arith.constant 0 : i32
    %c0_i32_0 = arith.constant 0 : i32
    %c0_i32_1 = arith.constant 0 : i32
    return %c0_i32, %c0_i32_0 : i32, i32
  }
  func.func @transform_3(%arg0: i32, %arg1: i32) -> (i32, i32) {
    %c0_i32 = arith.constant 0 : i32
    %c0_i32_0 = arith.constant 0 : i32
    return %c0_i32, %arg0 : i32, i32
  }
}

</mosaic_0001>

<llo_original>
// kernel: tpu_custom_call.1
$region0: #{tpu_custom_call.1}
  #allocation0 [shape = 'u32[]', space=smem, size = 0x4, offset = 0x4, fixed_abs, tag = 'smem constant byte address 0x4 - core index']
  #allocation1 [shape = 'u32[144,128]{1,0:T(1,128)}', space=vmem, size = 0x12000, scoped, tag = 'internal scratch']
  #allocation2 [shape = 'f32[1,1]{1,0:T(1,128)}', space=vmem, size = 0x200, scoped, tag = 'scratch operand']
  %s0 = inlined_call_operand.vmem [shape: f32[16,32], index: 0, kind: input, shape index: {}]
  %s1 = inlined_call_operand.hbm [shape: f32[16,32], index: 1, kind: input, shape index: {}]
  %s2 = inlined_call_operand.vmem [shape: f32[16,1], index: 2, kind: input, shape index: {}]
  %s3 = inlined_call_operand.hbm [shape: f32[1,256], index: 3, kind: output, shape index: {}]
  %s4 = sld [smem:[#allocation0]]
  $region57: #{tpu_custom_call.1} parent=0
    _
  %s6 = ssub.s32 1, %s4
  %s7 = scalar_select 0, %s6, %s4
  $region1: #{tpu_custom_call.1} parent=0
    #allocation3 [shape = 'u8[8192]{0}', space=vmem, size = 0x2000, scoped, tag = 'input window, operand 1']
    #allocation4 [shape = 's32[2]{0}', space=sflag, size = 0x8, scoped, tag = 'scoped memory for tpu_custom_call.1']
    #allocation5 [shape = 's32[2]{0}', space=sflag, size = 0x8, scoped, tag = 'scoped memory for tpu_custom_call.1']
    #allocation6 [shape = 'u8[1024]{0}', space=vmem, size = 0x400, scoped, tag = 'output window, operand 0']
    %8 = vsyncpa [#allocation4], 0
    %s9 = scalar_lea.sflag [#allocation4], 1
    %10 = vsyncpa %s9, 0
    %11 = vsyncpa [#allocation5], 0
    %s12 = scalar_lea.sflag [#allocation5], 1
    %13 = vsyncpa %s12, 0
    loop: start=0, step=1, limit=4
    $region2: #{tpu_custom_call.1} parent=1 // loop_pre_header
      _
    $region3: #{tpu_custom_call.1} parent=1 // loop_header
      %s15 = sphi 0, %s19
      %p16 = scmp.ge.s32.totalorder %s15, 4
      %s22 = sphi 0, %s34
      %s23 = sphi 0, %s30
      %s24 = sphi 0, %s22
      %s25 = sphi 0, %s23
      %s26 = sphi 0, %s24
      %s27 = sphi 0, %s25
      %s39 = sphi 0, %s41
      %s42 = sphi 0, %s39
      %s43 = sphi 0, %s42
      %s59 = sphi 0, %s43
      %s67 = sphi 0, %s69
      %s70 = sphi 0, %s67
      %s71 = sphi 0, %s70
      %s87 = sphi 0, %s71
      %s91 = sphi 0, %s91
      %s93 = sphi 0, %s91
      %s94 = sphi 0, %s93
      %s108 = sphi 0, %s94
      %s114 = sphi 0, %s116
      %s117 = sphi 0, %s114
      %s118 = sphi 0, %s117
      %s134 = sphi 0, %s118
    $region4: #{tpu_custom_call.1} parent=1 // loop_header_branch
      %18 = sbr.rel (%p16) target = $region8
    $region5: #{tpu_custom_call.1} parent=1 // loop_body
      %s20 = ssub.s32 %s15, 1
      %s21 = ssub.s32 %s15, 2
      %s28 = sadd.s32 1, %s23
      %p29 = scmp.ge.s32.totalorder %s28, 1
      %s30 = scalar_select %p29, 0, %s28
      %s31 = sadd.s32 1, %s22
      %s32 = scalar_select %p29, %s31, %s22
      %p33 = scmp.ge.s32.totalorder %s32, 2
      %s34 = scalar_select %p33, 0, %s32
      %s35 = sadd.s32 %s22, %s23
      %s36 = sadd.s32 %s34, %s30
      %s37 = ssub.s32 %s35, %s36
      %p38 = scmp.eq.s32.totalorder %s37, 0
      %s40 = sadd.s32 %s39, 1
      %s41 = scalar_select %p38, %s39, %s40
      %p44 = pneg %p38
      %p45 = scmp.eq.s32.totalorder %s15, 1
      %p46 = por %p44, %p45
      %p47 = scmp.ne.s32.totalorder %s39, %s42
      %p48 = scmp.eq.s32.totalorder %s15, 0
      %p49 = por %p47, %p48
      %p50 = scmp.ne.s32.totalorder %s39, %s42
      %p51 = scmp.eq.s32.totalorder %s20, 1
      %p52 = por %p50, %p51
      %p53 = scmp.ne.s32.totalorder %s42, %s43
      %p54 = scmp.eq.s32.totalorder %s20, 0
      %p55 = por %p53, %p54
      %p56 = scmp.ne.s32.totalorder %s42, %s43
      %p57 = scmp.eq.s32.totalorder %s21, 1
      %p58 = por %p56, %p57
      %p60 = scmp.ne.s32.totalorder %s43, %s59
      %p61 = scmp.eq.s32.totalorder %s21, 0
      %p62 = por %p60, %p61
      %s63 = sadd.s32 %s22, %s23
      %s64 = sadd.s32 %s34, %s30
      %s65 = ssub.s32 %s63, %s64
      %p66 = scmp.eq.s32.totalorder %s65, 0
      %s68 = sadd.s32 %s67, 1
      %s69 = scalar_select %p66, %s67, %s68
      %p72 = pneg %p66
      %p73 = scmp.eq.s32.totalorder %s15, 1
      %p74 = por %p72, %p73
      %p75 = scmp.ne.s32.totalorder %s67, %s70
      %p76 = scmp.eq.s32.totalorder %s15, 0
      %p77 = por %p75, %p76
      %p78 = scmp.ne.s32.totalorder %s67, %s70
      %p79 = scmp.eq.s32.totalorder %s20, 1
      %p80 = por %p78, %p79
      %p81 = scmp.ne.s32.totalorder %s70, %s71
      %p82 = scmp.eq.s32.totalorder %s20, 0
      %p83 = por %p81, %p82
      %p84 = scmp.ne.s32.totalorder %s70, %s71
      %p85 = scmp.eq.s32.totalorder %s21, 1
      %p86 = por %p84, %p85
      %p88 = scmp.ne.s32.totalorder %s71, %s87
      %p89 = scmp.eq.s32.totalorder %s21, 0
      %p90 = por %p88, %p89
      %s92 = sadd.s32 %s91, 1
      %p95 = scmp.eq.s32.totalorder %s15, 1
      %p96 = scmp.ne.s32.totalorder %s91, %s93
      %p97 = scmp.eq.s32.totalorder %s15, 0
      %p98 = por %p96, %p97
      %p99 = scmp.ne.s32.totalorder %s91, %s93
      %p100 = scmp.eq.s32.totalorder %s20, 1
      %p101 = por %p99, %p100
      %p102 = scmp.ne.s32.totalorder %s93, %s94
      %p103 = scmp.eq.s32.totalorder %s20, 0
      %p104 = por %p102, %p103
      %p105 = scmp.ne.s32.totalorder %s93, %s94
      %p106 = scmp.eq.s32.totalorder %s21, 1
      %p107 = por %p105, %p106
      %p109 = scmp.ne.s32.totalorder %s94, %s108
      %p110 = scmp.eq.s32.totalorder %s21, 0
      %p111 = por %p109, %p110
      %s112 = ssub.s32 %s22, %s34
      %p113 = scmp.eq.s32.totalorder %s112, 0
      %s115 = sadd.s32 %s114, 1
      %s116 = scalar_select %p113, %s114, %s115
      %p119 = pneg %p113
      %p120 = scmp.eq.s32.totalorder %s15, 1
      %p121 = por %p119, %p120
      %p122 = scmp.ne.s32.totalorder %s114, %s117
      %p123 = scmp.eq.s32.totalorder %s15, 0
      %p124 = por %p122, %p123
      %p125 = scmp.ne.s32.totalorder %s114, %s117
      %p126 = scmp.eq.s32.totalorder %s20, 1
      %p127 = por %p125, %p126
      %p128 = scmp.ne.s32.totalorder %s117, %s118
      %p129 = scmp.eq.s32.totalorder %s20, 0
      %p130 = por %p128, %p129
      %p131 = scmp.ne.s32.totalorder %s117, %s118
      %p132 = scmp.eq.s32.totalorder %s21, 1
      %p133 = por %p131, %p132
      %p135 = scmp.ne.s32.totalorder %s118, %s134
      %p136 = scmp.eq.s32.totalorder %s21, 0
      %p137 = por %p135, %p136
      %p138 = scmp.le.s32.totalorder 1, %s15
      %p139 = scmp.lt.s32.totalorder %s15, 3
      %p140 = pnand %p138, %p139
      %p141 = pneg %p140
      // Predicated region
      $region9: #{tpu_custom_call.1} parent=5 // pred_check
        _
      $region10: #{tpu_custom_call.1} parent=5 // pred_check_branch
        %143 = sbr.rel (%p140) target = $region12
      $region11: #{tpu_custom_call.1} parent=5 // pred_region
        %s144 = ssub.s32 %s15, 1
        // Predicated region
        $region13: #{tpu_custom_call.1} parent=11 // pred_check
          %p145 = pneg %p104
        $region14: #{tpu_custom_call.1} parent=11 // pred_check_branch
          %147 = sbr.rel (%p145) target = $region16
        $region15: #{tpu_custom_call.1} parent=11 // pred_region
          _
        $region16: #{tpu_custom_call.1} parent=11 // pred_fallthru
          _
      $region12: #{tpu_custom_call.1} parent=5 // pred_fallthru
        _
      %p148 = scmp.lt.s32.totalorder %s15, 2
      // Predicated region
      $region17: #{tpu_custom_call.1} parent=5 // pred_check
        %p149 = pneg %p148
      $region18: #{tpu_custom_call.1} parent=5 // pred_check_branch
        %151 = sbr.rel (%p149) target = $region20
      $region19: #{tpu_custom_call.1} parent=5 // pred_region
        // Predicated region
        $region21: #{tpu_custom_call.1} parent=19 // pred_check
          %p152 = pneg %p49
        $region22: #{tpu_custom_call.1} parent=19 // pred_check_branch
          %154 = sbr.rel (%p152) target = $region24
        $region23: #{tpu_custom_call.1} parent=19 // pred_region
          %s155 = sadd.s32 %s22, %s23
          %p156 = scmp.lt.s32.totalorder %s155, 1
          %s157 = scalar_select %p156, %s155, 1
          %s158 = smul.addr %s157, 8
          %s159 = scalar_lea.vmem %s0, %s158
          %s160 = sadd.s32 %s22, %s23
        $region24: #{tpu_custom_call.1} parent=19 // pred_fallthru
          _
        // Predicated region
        $region25: #{tpu_custom_call.1} parent=19 // pred_check
          %p161 = pneg %p77
        $region26: #{tpu_custom_call.1} parent=19 // pred_check_branch
          %163 = sbr.rel (%p161) target = $region28
        $region27: #{tpu_custom_call.1} parent=19 // pred_region
          %s164 = sand.u32 %s67, 1
          %s165 = scalar_lea.sflag [#allocation4], %s164
          %s166 = sand.u32 %s67, 1
          %s167 = smul.addr %s166, 8
          %s168 = scalar_lea.vmem [#allocation3], %s167
          %s169 = sadd.s32 %s22, %s23
          %s171 = ssub.s32 128, 128
          %172 = vsyncadd %s165, %s171
          %s173 = smul.addr %s169, 128
          %s174 = scalar_lea.hbm %s1, %s173
          %s176 = sshll.u32 %s168, 4
          %s177 = int_to_ptr.vmem [resolvable:$true] %s176
          %179 = dma.hbm_to_vmem [thread:$0]  %s174, 128, %s177, %s165
        $region28: #{tpu_custom_call.1} parent=19 // pred_fallthru
          _
      $region20: #{tpu_custom_call.1} parent=5 // pred_fallthru
        _
      %p180 = scmp.le.s32.totalorder 1, %s15
      %p181 = scmp.lt.s32.totalorder %s15, 3
      %p182 = pnand %p180, %p181
      %p183 = pneg %p182
      // Predicated region
      $region29: #{tpu_custom_call.1} parent=5 // pred_check
        _
      $region30: #{tpu_custom_call.1} parent=5 // pred_check_branch
        %185 = sbr.rel (%p182) target = $region32
      $region31: #{tpu_custom_call.1} parent=5 // pred_region
        %s186 = ssub.s32 %s15, 1
        %s187 = sand.u32 %s70, 1
        %s188 = scalar_lea.sflag [#allocation4], %s187
        %s189 = sand.u32 %s70, 1
        %s190 = smul.addr %s189, 8
        %s191 = scalar_lea.vmem [#allocation3], %s190
        // Predicated region
        $region33: #{tpu_custom_call.1} parent=31 // pred_check
          %p192 = pneg %p83
        $region34: #{tpu_custom_call.1} parent=31 // pred_check_branch
          %194 = sbr.rel (%p192) target = $region36
        $region35: #{tpu_custom_call.1} parent=31 // pred_region
          %195 = dma.done %s188, 128
        $region36: #{tpu_custom_call.1} parent=31 // pred_fallthru
          _
        %s196 = sadd.s32 %s24, %s25
        %p197 = scmp.lt.s32.totalorder %s196, 1
        %s198 = scalar_select %p197, %s196, 1
        %s199 = smul.addr %s198, 8
        %s200 = scalar_lea.vmem %s0, %s199
        %p201 = pneg %p55
        %p202 = pneg %p52
        %s203 = sand.u32 %s70, 1
        %s204 = scalar_lea.sflag [#allocation4], %s203
        %s205 = sand.u32 %s70, 1
        %s206 = smul.addr %s205, 8
        %s207 = scalar_lea.vmem [#allocation3], %s206
        %p208 = pneg %p83
        %p209 = pneg %p80
        %p210 = pneg %p104
        %p211 = pneg %p101
        %p212 = pneg %p130
        %p213 = pneg %p127
        %s214 = sand.u32 %s117, 1
        %s215 = scalar_lea.sflag [#allocation5], %s214
        %s216 = sand.u32 %s117, 1
        %s217 = scalar_lea.vmem [#allocation6], %s216
        %s218 = sadd.s32 %s24, %s25
        %p219 = scmp.lt.s32.totalorder %s218, 1
        %s220 = scalar_select %p219, %s218, 1
        %s221 = smul.addr %s220, 8
        %s222 = scalar_lea.vmem %s0, %s221
        %s223 = sadd.s32 %s24, %s25
        %s224 = sadd.s32 %s24, %s25
        %p225 = scmp.eq.s32.totalorder %s25, 0
        // Predicated region
        $region37: #{tpu_custom_call.1} parent=31 // pred_check
          %p226 = pneg %p225
        $region38: #{tpu_custom_call.1} parent=31 // pred_check_branch
          %228 = sbr.rel (%p226) target = $region40
        $region39: #{tpu_custom_call.1} parent=31 // pred_region
          %vm229 = vcmask 0
          %230 = vst.msk [vmem:[#allocation2] sm:$0x1] %vm229, 0.0
        $region40: #{tpu_custom_call.1} parent=31 // pred_fallthru
          _
        %v231 = vld [vmem:[%s222] sm:$0xff]
        %v232 = vld [vmem:[%s191] sm:$0xff]
        %v233 = vmul.f32 %v231, %v232
        %vm234 = vcmask 261120
        %v235 = vsel %vm234, %v233, 0.0
        %236 = vadd.xlane.f32.xlu0 %v235
        %v237 = vpop.xlane.xlu0 %236
        %v238 = vmul.f32 %v231, %v231
        %v239 = vsel %vm234, %v238, 0.0
        %240 = vadd.xlane.f32.xlu0 %v239
        %v241 = vpop.xlane.xlu0 %240
        %v242 = vmul.f32 %v232, %v232
        %v243 = vsel %vm234, %v242, 0.0
        %244 = vadd.xlane.f32.xlu0 %v243
        %v245 = vpop.xlane.xlu0 %244
        %v246 = vmul.f32 %v241, %v245
        %v247 = vmax.f32 %v246, 1e-16
        %v248 = vrsqrt.pop %v247
        %v249 = vmul.f32 %v237, %v248
        %s250 = sadd.s32 %s24, %s25
        %s251 = smul.u32 %s250, 8
        %s252 = scalar_lea.vmem %s2, %s251
        %v253 = vld [vmem:[%s252] sm:$0xff]
        %v254 = vsub.f32 %v249, %v253
        %v255 = vld [vmem:[#allocation2] sm:$0x1]
        %v256 = vmul.f32 %v254, %v254
        %vm257 = vcmask 7168
        %v258 = vsel %vm257, %v256, 0.0
        %259 = vadd.xlane.f32.xlu0 %v258
        %v260 = vpop.xlane.xlu0 %259
        %v261 = vrot.slane %v260, 4
        %v262 = vadd.f32 %v260, %v261
        %v263 = vrot.slane %v262, 2
        %v264 = vadd.f32 %v262, %v263
        %v265 = vrot.slane %v264, 1
        %v266 = vadd.f32 %v264, %v265
        %s267 = vtos %v266
        %v268 = vstv %s267
        %v269 = vadd.f32 %v255, %v268
        %vm270 = vcmask 0
        %271 = vst.msk [vmem:[#allocation2] sm:$0x1] %vm270, %v269
        // Predicated region
        $region41: #{tpu_custom_call.1} parent=31 // pred_check
          %p272 = pneg %p225
        $region42: #{tpu_custom_call.1} parent=31 // pred_check_branch
          %274 = sbr.rel (%p272) target = $region44
        $region43: #{tpu_custom_call.1} parent=31 // pred_region
          %v275 = vld [vmem:[#allocation2] sm:$0x1]
          %277 = vset.pattern.permute.xlu0 0
          %278 = vperm.xlu0 %277, %v275
          %v279 = vpop.permute.xlu0 %278
          %v281 = vlaneseq
          %v282 = vshrl.u32 %v281, 7
          %v283 = vsub.s32 0, %v282
          %v284 = vrot.slane %v279, %v283
          %285 = vst [vmem:[%s217] sm:$0x1] %v284
        $region44: #{tpu_custom_call.1} parent=31 // pred_fallthru
          _
        %s286 = sand.u32 %s117, 1
        %s287 = scalar_lea.sflag [#allocation5], %s286
        %s288 = sand.u32 %s117, 1
        %s289 = scalar_lea.vmem [#allocation6], %s288
        // Predicated region
        $region45: #{tpu_custom_call.1} parent=31 // pred_check
          %p290 = pneg %p127
        $region46: #{tpu_custom_call.1} parent=31 // pred_check_branch
          %292 = sbr.rel (%p290) target = $region48
        $region47: #{tpu_custom_call.1} parent=31 // pred_region
          %s294 = ssub.s32 16, 16
          %295 = vsyncadd %s287, %s294
          %s296 = smul.addr %s24, 16
          %s297 = scalar_lea.hbm %s3, %s296
          %s299 = sshll.u32 %s289, 4
          %s300 = int_to_ptr.vmem [resolvable:$true] %s299
          %302 = dma.vmem_to_hbm [thread:$0]  %s300, 16, %s297, %s287
        $region48: #{tpu_custom_call.1} parent=31 // pred_fallthru
          _
      $region32: #{tpu_custom_call.1} parent=5 // pred_fallthru
        _
      %p303 = scmp.le.s32.totalorder 2, %s15
      // Predicated region
      $region49: #{tpu_custom_call.1} parent=5 // pred_check
        %p304 = pneg %p303
      $region50: #{tpu_custom_call.1} parent=5 // pred_check_branch
        %306 = sbr.rel (%p304) target = $region52
      $region51: #{tpu_custom_call.1} parent=5 // pred_region
        %s307 = ssub.s32 %s15, 2
        // Predicated region
        $region53: #{tpu_custom_call.1} parent=51 // pred_check
          %p308 = pneg %p133
        $region54: #{tpu_custom_call.1} parent=51 // pred_check_branch
          %310 = sbr.rel (%p308) target = $region56
        $region55: #{tpu_custom_call.1} parent=51 // pred_region
          %s311 = sand.u32 %s118, 1
          %s312 = scalar_lea.sflag [#allocation5], %s311
          %s313 = sand.u32 %s118, 1
          %s314 = scalar_lea.vmem [#allocation6], %s313
          %315 = dma.done %s312, 16
        $region56: #{tpu_custom_call.1} parent=51 // pred_fallthru
          _
      $region52: #{tpu_custom_call.1} parent=5 // pred_fallthru
        _
    $region6: #{tpu_custom_call.1} parent=1 // loop_footer
      %s19 = sadd.s32 1, %s15
    $region7: #{tpu_custom_call.1} parent=1 // loop_footer_branch
      %14 = sbr.rel target = $region3
    $region8: #{tpu_custom_call.1} parent=1 // loop_exit
      _
    %316 = vsyncpa [#allocation4], 1
    %s317 = scalar_lea.sflag [#allocation4], 1
    %318 = vsyncpa %s317, 1
    %319 = vsyncpa [#allocation5], 1
    %s320 = scalar_lea.sflag [#allocation5], 1
    %321 = vsyncpa %s320, 1

</llo_original>
